<compile_context>
chip_gen: v7x
topology: tpu7x:2x2x1
jax: 0.10.0
libtpu: 0.0.40
codegen_flags: <defaults>
</compile_context>

<pallas_src>
import functools

import jax
import jax.numpy as jnp
from jax.experimental import pallas as pl
from jax.experimental.pallas import tpu as pltpu

EPS = 1e-5
NEG_SLOPE = 0.2


# ------------------------------ small helpers -------------------------------

@functools.lru_cache(None)
def _vmem_limit_bytes():
    """~3/4 of physical VMEM (96 MiB on v5e/v6e, 48 MiB on v7x)."""
    try:
        cap = int(getattr(pltpu.get_tpu_info(), "vmem_capacity_bytes", 0)) or (64 << 20)
    except Exception:
        cap = 64 << 20          # safe everywhere
    return (cap * 3) // 4


def _compiler_params(sem):
    return pltpu.CompilerParams(dimension_semantics=sem,
                                vmem_limit_bytes=_vmem_limit_bytes())


@functools.lru_cache(None)
def _wide_mxu():
    """True on the 256-wide MXU generations (v6e / v7x)."""
    try:
        kind = jax.devices()[0].device_kind.lower()
    except Exception:
        return False
    return ("v6" in kind) or ("v7" in kind)


def _cout_tile(c_out):
    if c_out <= 128:
        return c_out                                   # full (lane-dense) block
    assert c_out % 128 == 0, "C_out > 128 must be a multiple of 128"
    if c_out % 256 == 0 and _wide_mxu():
        return 256                                     # fills the 2x256^2 MXU
    return 128                                         # matches v5e's 4x128^2 MXU


def _m_tile(m, cap=2048):
    """Largest multiple-of-8 divisor of m that is <= cap (or m itself)."""
    if m <= cap:
        return m
    t = cap - cap % 8
    while t >= 8:
        if m % t == 0:
            return t
        t -= 8
    return m


def _leaky_relu(y):
    return jnp.maximum(y, NEG_SLOPE * y)


def _sigmoid(y):
    # exp and the approximate reciprocal both run on the EUP slot.
    return pl.reciprocal(1.0 + jnp.exp(-y), approx=True)


# ------------------------------ Pallas kernels ------------------------------

def _conv_core(xs0_ref, xs1_ref, w_ref, patch_ref, *, ho, wo, band):
    """Build the (Ho*Wo, 4*band) im2col scratch (once per image) and run the
    single K = 4*band bf16 MXU matmul with f32 accumulation."""
    m = ho * wo

    @pl.when(pl.program_id(1) == 0)      # j is "arbitrary": build once per image
    def _():
        # Four taps, each ONE contiguous, lane-aligned bf16 slab copy.
        taps = ((0, xs0_ref), (0, xs1_ref), (1, xs0_ref), (1, xs1_ref))
        for idx, (ty, xs) in enumerate(taps):
            patch_ref[:, idx * band:(idx + 1) * band] = xs[ty * wo:ty * wo + m, :]

    return jnp.dot(patch_ref[...], w_ref[...], preferred_element_type=jnp.float32)


def _conv_stats_kernel(xs0_ref, xs1_ref, w_ref, o_ref, stats_ref, patch_ref,
                       *, ho, wo, band):
    """4x4/s2 conv (no bias) + per-image channel sum / sum-of-squares."""
    acc = _conv_core(xs0_ref, xs1_ref, w_ref, patch_ref, ho=ho, wo=wo, band=band)
    o_ref[...] = acc.astype(o_ref.dtype)
    stats_ref[...] = jnp.concatenate(
        [jnp.sum(acc, axis=0, keepdims=True),
         jnp.sum(acc * acc, axis=0, keepdims=True)], axis=0)   # one (2, tco) store


def _conv_bias_act_kernel(xs0_ref, xs1_ref, w_ref, b_ref, o_ref, patch_ref,
                          *, ho, wo, band, act):
    """4x4/s2 conv + bias + activation (first_layer / last_layer variants)."""
    acc = _conv_core(xs0_ref, xs1_ref, w_ref, patch_ref, ho=ho, wo=wo, band=band)
    o_ref[...] = act(acc + b_ref[...]).astype(o_ref.dtype)


def _affine_lrelu_kernel(y_ref, scale_ref, shift_ref, o_ref):
    """Folded BatchNorm (y*scale + shift) + LeakyReLU(0.2), bf16 in/out."""
    y = y_ref[...].astype(jnp.float32) * scale_ref[...] + shift_ref[...]
    o_ref[...] = jnp.maximum(y, NEG_SLOPE * y).astype(o_ref.dtype)


# ----------------------------- JAX-side plumbing -----------------------------

def _shifted_s2d(x_nhwc):
    """pad=1 + 2x2 space-to-depth, emitted as TWO column-shifted (tx=0/1),
    channel-lane-padded views of shape (N, Hs*Wo, band) so that every in-kernel
    tap copy is one contiguous slab (no reshape, no per-row unroll)."""
    n, h, w, c = x_nhwc.shape
    xp = jnp.pad(x_nhwc, ((0, 0), (1, 1), (1, 1), (0, 0)))
    hs, ws = (h + 2) // 2, (w + 2) // 2
    s = xp.reshape(n, hs, 2, ws, 2, c)
    s = jnp.transpose(s, (0, 1, 3, 2, 4, 5)).reshape(n, hs, ws, 4 * c)
    c4 = 4 * c
    band = -(-c4 // 128) * 128                      # lane-align each tap's K band
    wo = w // 2
    outs = []
    for tx in (0, 1):
        v = s[:, :, tx:tx + wo, :]
        if band > c4:
            v = jnp.pad(v, ((0, 0), (0, 0), (0, 0), (0, band - c4)))
        outs.append(v.reshape(n, hs * wo, band))
    return outs[0], outs[1], band


def _pack_weight(w_oihw, band):
    """(C_out, C_in, 4, 4) torch layout -> (4*band, C_out); K is ordered as
    (ty, tx | dy, dx, c_in [zero-pad to band]) to match the in-kernel scatter."""
    co, ci, kh, kw = w_oihw.shape
    assert kh == 4 and kw == 4
    w = jnp.transpose(w_oihw, (2, 3, 1, 0))          # (kh, kw, ci, co)
    w = w.reshape(2, 2, 2, 2, ci, co)                # (ty, dy, tx, dx, ci, co)
    w = jnp.transpose(w, (0, 2, 1, 3, 4, 5))         # (ty, tx, dy, dx, ci, co)
    w = w.reshape(4, 4 * ci, co)                     # (tap, band_raw, co)
    if band > 4 * ci:
        w = jnp.pad(w, ((0, 0), (0, band - 4 * ci), (0, 0)))
    return w.reshape(4 * band, co)


def _conv4x4_s2(xs0, xs1, wt, bias, act, ho, wo, with_stats):
    """xs0/xs1: (N, Hs*Wo, band) bf16 shifted s2d inputs; wt: (4*band, C_out) bf16."""
    n, hswo, band = xs0.shape
    k, c_out = wt.shape
    m = ho * wo
    tco = _cout_tile(c_out)
    grid = (n, c_out // tco)

    x_spec = pl.BlockSpec((None, hswo, band), lambda i, j: (i, 0, 0))
    w_spec = pl.BlockSpec((k, tco), lambda i, j: (0, j))
    o_spec = pl.BlockSpec((None, m, tco), lambda i, j: (i, 0, j))
    scratch = [pltpu.VMEM((m, k), jnp.bfloat16)]      # persistent im2col scratch
    cp = _compiler_params(("parallel", "arbitrary"))  # j serial -> build amortized

    if with_stats:
        kernel = functools.partial(_conv_stats_kernel, ho=ho, wo=wo, band=band)
        return pl.pallas_call(
            kernel,
            out_shape=(jax.ShapeDtypeStruct((n, m, c_out), jnp.bfloat16),
                       jax.ShapeDtypeStruct((n, 2, c_out), jnp.float32)),
            grid=grid,
            in_specs=[x_spec, x_spec, w_spec],
            out_specs=(o_spec,
                       pl.BlockSpec((None, 2, tco), lambda i, j: (i, 0, j))),
            scratch_shapes=scratch,
            compiler_params=cp,
        )(xs0, xs1, wt)

    kernel = functools.partial(_conv_bias_act_kernel, ho=ho, wo=wo, band=band, act=act)
    return pl.pallas_call(
        kernel,
        out_shape=jax.ShapeDtypeStruct((n, m, c_out), jnp.bfloat16),
        grid=grid,
        in_specs=[x_spec, x_spec, w_spec,
                  pl.BlockSpec((1, tco), lambda i, j: (0, j))],
        out_specs=o_spec,
        scratch_shapes=scratch,
        compiler_params=cp,
    )(xs0, xs1, wt, bias)


def _affine_lrelu(y, scale, shift):
    n, m, c_out = y.shape
    tco = _cout_tile(c_out)
    tm = _m_tile(m)
    y_spec = pl.BlockSpec((None, tm, tco), lambda i, r, j: (i, r, j))
    vec = pl.BlockSpec((1, tco), lambda i, r, j: (0, j))
    return pl.pallas_call(
        _affine_lrelu_kernel,
        out_shape=jax.ShapeDtypeStruct((n, m, c_out), jnp.bfloat16),
        grid=(n, m // tm, c_out // tco),
        in_specs=[y_spec, vec, vec],
        out_specs=y_spec,
        input_output_aliases={0: 0},                  # update y in place
        compiler_params=_compiler_params(("parallel", "parallel", "parallel")),
    )(y, scale, shift)


# --------------------------------- forward ----------------------------------

def patch_conv_forward(params, x_nchw, *, first_layer=False, last_layer=False):
    """Pallas forward of Patch_Conv (Conv2d k=4 s=2 p=1 + activation / BN).
    Output is bf16 (downstream layers consume bf16 anyway)."""
    x = jnp.transpose(x_nchw, (0, 2, 3, 1)).astype(jnp.bfloat16)   # NHWC, bf16 early
    n, h, w, _ = x.shape
    assert h % 2 == 0 and w % 2 == 0, "even spatial dims required"
    ho, wo = h // 2, w // 2

    xs0, xs1, band = _shifted_s2d(x)
    wt = _pack_weight(params['w'], band).astype(jnp.bfloat16)
    c_out = wt.shape[1]

    if first_layer or last_layer:
        act = _sigmoid if last_layer else _leaky_relu
        bias = params['b'].reshape(1, c_out).astype(jnp.float32)
        y = _conv4x4_s2(xs0, xs1, wt, bias, act, ho, wo, with_stats=False)
    else:
        # Pass 1: conv (no bias) + per-image channel partial sums (f32 stats).
        y, stats = _conv4x4_s2(xs0, xs1, wt, None, None, ho, wo, with_stats=True)
        # Tiny per-channel reduction in plain JAX (C_out-sized vectors only).
        count = n * ho * wo
        mean = stats[:, 0, :].sum(axis=0) / count
        var = jnp.maximum(stats[:, 1, :].sum(axis=0) / count - mean * mean, 0.0)
        scale = params['gamma'] * jax.lax.rsqrt(var + EPS)
        shift = params['beta'] - mean * scale
        # Pass 2: folded BN + LeakyReLU, tiled over m, in-place on y.
        y = _affine_lrelu(y, scale.reshape(1, c_out).astype(jnp.float32),
                          shift.reshape(1, c_out).astype(jnp.float32))

    return jnp.transpose(y.reshape(n, ho, wo, c_out), (0, 3, 1, 2))   # NCHW


# ------------------------------- parameters ---------------------------------

def init_patch_conv(key, in_channels, out_channels, first_layer=False, last_layer=False):
    kw, kb = jax.random.split(key)
    fan_in = in_channels * 16
    bound = float(1.0 / (fan_in ** 0.5))
    p = {'w': jax.random.uniform(kw, (out_channels, in_channels, 4, 4),
                                 jnp.float32, -bound, bound)}
    if first_layer or last_layer:
        p['b'] = jax.random.uniform(kb, (out_channels,), jnp.float32, -bound, bound)
    else:   # middle block: Conv2d(bias=False) + BatchNorm2d
        p['gamma'] = jnp.ones((out_channels,), jnp.float32)
        p['beta'] = jnp.zeros((out_channels,), jnp.float32)
    return p


class PatchConv:
    """JAX/Pallas counterpart of the PyTorch Patch_Conv module."""

    def __init__(self, key, in_channels, out_channels, strides=2,
                 firist_layer=False, last_layer=False):
        assert strides == 2, "only the module-default stride=2 is implemented"
        self.first_layer, self.last_layer = firist_layer, last_layer
        self.params = init_patch_conv(key, in_channels, out_channels,
                                      firist_layer, last_layer)

    def __call__(self, x_nchw):
        return patch_conv_forward(self.params, x_nchw,
                                  first_layer=self.first_layer,
                                  last_layer=self.last_layer)


# ------------------------------ plain-JAX reference --------------------------

def patch_conv_reference(params, x_nchw, *, first_layer=False, last_layer=False):
    x = jnp.transpose(x_nchw, (0, 2, 3, 1)).astype(jnp.float32)
    w = jnp.transpose(params['w'], (2, 3, 1, 0))   # HWIO
    y = jax.lax.conv_general_dilated(
        x, w, window_strides=(2, 2), padding=((1, 1), (1, 1)),
        dimension_numbers=('NHWC', 'HWIO', 'NHWC'))
    if first_layer or last_layer:
        y = y + params['b'].reshape(1, 1, 1, -1)
        y = jax.nn.sigmoid(y) if last_layer else jnp.where(y >= 0, y, NEG_SLOPE * y)
    else:   # training-mode BatchNorm2d statistics (matches the kernel path)
        mean = jnp.mean(y, axis=(0, 1, 2))
        var = jnp.mean((y - mean) ** 2, axis=(0, 1, 2))
        y = (y - mean) * jax.lax.rsqrt(var + EPS) * params['gamma'] + params['beta']
        y = jnp.where(y >= 0, y, NEG_SLOPE * y)
    return jnp.transpose(y, (0, 3, 1, 2))


# ----------------------------------- main ------------------------------------

if __name__ == "__main__":
    key = jax.random.PRNGKey(0)
    kx, k1, k2, k3 = jax.random.split(key, 4)
    x = jax.random.normal(kx, (2, 4, 16, 16), jnp.float32)

    fwd = jax.jit(patch_conv_forward, static_argnames=("first_layer", "last_layer"))

    def check(y, ref, shape):
        assert y.shape == shape, (y.shape, shape)
        assert bool(jnp.all(jnp.isfinite(y.astype(jnp.float32))))
        err = float(jnp.max(jnp.abs(y.astype(jnp.float32) - ref)))
        assert err < 5e-2, err

    # first layer: Conv(4->32, k4 s2 p1) + bias + LeakyReLU(0.2)
    p1 = init_patch_conv(k1, 4, 32, first_layer=True)
    y1 = fwd(p1, x, first_layer=True)
    jax.block_until_ready(y1)
    check(y1, patch_conv_reference(p1, x, first_layer=True), (2, 32, 8, 8))

    # default block: Conv(32->64, bias=False) + BatchNorm2d(train) + LeakyReLU(0.2)
    p2 = init_patch_conv(k2, 32, 64)
    y2 = fwd(p2, y1)
    jax.block_until_ready(y2)
    check(y2, patch_conv_reference(p2, y1), (2, 64, 4, 4))

    # last layer: Conv(64->1) + bias + Sigmoid
    p3 = init_patch_conv(k3, 64, 1, last_layer=True)
    y3 = fwd(p3, y2, last_layer=True)
    jax.block_until_ready(y3)
    check(y3, patch_conv_reference(p3, y2, last_layer=True), (2, 1, 2, 2))

    print("KERNEL_OK")
</pallas_src>

<mosaic_0001>
module attributes {stable_mosaic.version = 11 : i64} {
  func.func @_conv_bias_act_kernel(%arg0: i32, %arg1: i32, %arg2: memref<1x72x128xbf16, #tpu.memory_space<vmem>>, %arg3: memref<1x72x128xbf16, #tpu.memory_space<vmem>>, %arg4: memref<512x32xbf16, #tpu.memory_space<vmem>>, %arg5: memref<1x32xf32, #tpu.memory_space<vmem>>, %arg6: memref<1x64x32xbf16, #tpu.memory_space<vmem>>, %arg7: memref<64x512xbf16, #tpu.memory_space<vmem>>) attributes {dimension_semantics = [#tpu.dimension_semantics<parallel>, #tpu.dimension_semantics<arbitrary>], iteration_bounds = array<i64: 2, 1>, scalar_prefetch = 0 : i64, scratch_operands = 1 : i64, tpu.core_type = #tpu.core_type<tc>, window_params = [{transform_indices = @transform_0, window_bounds = array<i64: 1, 72, 128>}, {transform_indices = @transform_1, window_bounds = array<i64: 1, 72, 128>}, {transform_indices = @transform_2, window_bounds = array<i64: 512, 32>}, {transform_indices = @transform_3, window_bounds = array<i64: 1, 32>}, {transform_indices = @transform_4, window_bounds = array<i64: 1, 64, 32>}]} {
    %c0_i32 = arith.constant 0 : i32
    %0 = arith.cmpi eq, %arg1, %c0_i32 : i32
    %1 = arith.extui %0 : i1 to i32
    %c0_i32_0 = arith.constant 0 : i32
    %2 = arith.cmpi ne, %1, %c0_i32_0 : i32
    scf.if %2 {
      %c0_10 = arith.constant 0 : index
      %c0_11 = arith.constant 0 : index
      %c0_12 = arith.constant 0 : index
      %16 = vector.load %arg2[%c0_10, %c0_11, %c0_12] : memref<1x72x128xbf16, #tpu.memory_space<vmem>>, vector<1x64x128xbf16>
      %17 = vector.shape_cast %16 : vector<1x64x128xbf16> to vector<64x128xbf16>
      %c0_13 = arith.constant 0 : index
      %c0_14 = arith.constant 0 : index
      %18 = vector.load %arg7[%c0_13, %c0_14] : memref<64x512xbf16, #tpu.memory_space<vmem>>, vector<64x128xbf16>
      tpu.vector_store %arg7[%c0_13, %c0_14], %17 {strides = array<i32>} : memref<64x512xbf16, #tpu.memory_space<vmem>>, vector<64x128xbf16>,
      %c0_15 = arith.constant 0 : index
      %c0_16 = arith.constant 0 : index
      %c0_17 = arith.constant 0 : index
      %19 = vector.load %arg3[%c0_15, %c0_16, %c0_17] : memref<1x72x128xbf16, #tpu.memory_space<vmem>>, vector<1x64x128xbf16>
      %20 = vector.shape_cast %19 : vector<1x64x128xbf16> to vector<64x128xbf16>
      %c0_18 = arith.constant 0 : index
      %c128 = arith.constant 128 : index
      %21 = vector.load %arg7[%c0_18, %c128] : memref<64x512xbf16, #tpu.memory_space<vmem>>, vector<64x128xbf16>
      tpu.vector_store %arg7[%c0_18, %c128], %20 {strides = array<i32>} : memref<64x512xbf16, #tpu.memory_space<vmem>>, vector<64x128xbf16>,
      %c0_19 = arith.constant 0 : index
      %c8 = arith.constant 8 : index
      %c0_20 = arith.constant 0 : index
      %22 = vector.load %arg2[%c0_19, %c8, %c0_20] : memref<1x72x128xbf16, #tpu.memory_space<vmem>>, vector<1x64x128xbf16>
      %23 = vector.shape_cast %22 : vector<1x64x128xbf16> to vector<64x128xbf16>
      %c0_21 = arith.constant 0 : index
      %c256 = arith.constant 256 : index
      %24 = vector.load %arg7[%c0_21, %c256] : memref<64x512xbf16, #tpu.memory_space<vmem>>, vector<64x128xbf16>
      tpu.vector_store %arg7[%c0_21, %c256], %23 {strides = array<i32>} : memref<64x512xbf16, #tpu.memory_space<vmem>>, vector<64x128xbf16>,
      %c0_22 = arith.constant 0 : index
      %c8_23 = arith.constant 8 : index
      %c0_24 = arith.constant 0 : index
      %25 = vector.load %arg3[%c0_22, %c8_23, %c0_24] : memref<1x72x128xbf16, #tpu.memory_space<vmem>>, vector<1x64x128xbf16>
      %26 = vector.shape_cast %25 : vector<1x64x128xbf16> to vector<64x128xbf16>
      %c0_25 = arith.constant 0 : index
      %c384 = arith.constant 384 : index
      %27 = vector.load %arg7[%c0_25, %c384] : memref<64x512xbf16, #tpu.memory_space<vmem>>, vector<64x128xbf16>
      tpu.vector_store %arg7[%c0_25, %c384], %26 {strides = array<i32>} : memref<64x512xbf16, #tpu.memory_space<vmem>>, vector<64x128xbf16>,
    } else {
    }
    %c0 = arith.constant 0 : index
    %c0_1 = arith.constant 0 : index
    %3 = vector.load %arg7[%c0, %c0_1] : memref<64x512xbf16, #tpu.memory_space<vmem>>, vector<64x512xbf16>
    %c0_2 = arith.constant 0 : index
    %c0_3 = arith.constant 0 : index
    %4 = vector.load %arg4[%c0_2, %c0_3] : memref<512x32xbf16, #tpu.memory_space<vmem>>, vector<512x32xbf16>
    %cst = arith.constant dense<0.000000e+00> : vector<64x32xf32>
    %5 = tpu.matmul %3, %4, %cst {dimension_numbers = #tpu.dot_dimension_numbers<[1], [0], [0], [1], [0, 0, 1, 1], [], []>} : vector<64x512xbf16>, vector<512x32xbf16>, vector<64x32xf32> -> vector<64x32xf32>
    %c0_4 = arith.constant 0 : index
    %c0_5 = arith.constant 0 : index
    %6 = vector.load %arg5[%c0_4, %c0_5] : memref<1x32xf32, #tpu.memory_space<vmem>>, vector<1x32xf32>
    %7 = vector.broadcast %6 : vector<1x32xf32> to vector<64x32xf32>
    %8 = arith.addf %5, %7 : vector<64x32xf32>
    %cst_6 = arith.constant 2.000000e-01 : f32
    %9 = vector.broadcast %cst_6 : f32 to vector<64x32xf32>
    %10 = arith.mulf %9, %8 : vector<64x32xf32>
    %11 = arith.maximumf %8, %10 : vector<64x32xf32>
    %12 = arith.truncf %11 : vector<64x32xf32> to vector<64x32xbf16>
    %c0_7 = arith.constant 0 : index
    %c0_8 = arith.constant 0 : index
    %c0_9 = arith.constant 0 : index
    %13 = vector.load %arg6[%c0_7, %c0_8, %c0_9] : memref<1x64x32xbf16, #tpu.memory_space<vmem>>, vector<1x64x32xbf16>
    %14 = vector.shape_cast %13 : vector<1x64x32xbf16> to vector<64x32xbf16>
    %15 = vector.shape_cast %12 : vector<64x32xbf16> to vector<1x64x32xbf16>
    tpu.vector_store %arg6[%c0_7, %c0_8, %c0_9], %15 {strides = array<i32>} : memref<1x64x32xbf16, #tpu.memory_space<vmem>>, vector<1x64x32xbf16>,
    return
  }
  func.func @transform_0(%arg0: i32, %arg1: i32) -> (i32, i32, i32) {
    %c0_i32 = arith.constant 0 : i32
    %c0_i32_0 = arith.constant 0 : i32
    %c0_i32_1 = arith.constant 0 : i32
    return %arg0, %c0_i32, %c0_i32_0 : i32, i32, i32
  }
  func.func @transform_1(%arg0: i32, %arg1: i32) -> (i32, i32, i32) {
    %c0_i32 = arith.constant 0 : i32
    %c0_i32_0 = arith.constant 0 : i32
    %c0_i32_1 = arith.constant 0 : i32
    return %arg0, %c0_i32, %c0_i32_0 : i32, i32, i32
  }
  func.func @transform_2(%arg0: i32, %arg1: i32) -> (i32, i32) {
    %c0_i32 = arith.constant 0 : i32
    %c0_i32_0 = arith.constant 0 : i32
    return %c0_i32, %arg1 : i32, i32
  }
  func.func @transform_3(%arg0: i32, %arg1: i32) -> (i32, i32) {
    %c0_i32 = arith.constant 0 : i32
    %c0_i32_0 = arith.constant 0 : i32
    return %c0_i32, %arg1 : i32, i32
  }
  func.func @transform_4(%arg0: i32, %arg1: i32) -> (i32, i32, i32) {
    %c0_i32 = arith.constant 0 : i32
    %c0_i32_0 = arith.constant 0 : i32
    return %arg0, %c0_i32, %arg1 : i32, i32, i32
  }
}

</mosaic_0001>

<llo_original>
// kernel: patch_conv_forward.1
$region0: #{patch_conv_forward.1}
  #allocation0 [shape = 'u32[]', space=smem, size = 0x4, offset = 0x4, fixed_abs, tag = 'smem constant byte address 0x4 - core index']
  #allocation1 [shape = 'u32[144,128]{1,0:T(1,128)}', space=vmem, size = 0x12000, scoped, tag = 'internal scratch']
  #allocation2 [shape = 'bf16[64,512]{1,0:T(16,128)(2,1)}', space=vmem, size = 0x10000, scoped, tag = 'scratch operand']
  %s0 = inlined_call_operand.vmem [shape: bf16[2,72,128], index: 0, kind: input, shape index: {}]
  %s1 = inlined_call_operand.vmem [shape: bf16[2,72,128], index: 1, kind: input, shape index: {}]
  %s2 = inlined_call_operand.vmem [shape: bf16[512,32], index: 2, kind: input, shape index: {}]
  %s3 = inlined_call_operand.vmem [shape: f32[1,32], index: 3, kind: input, shape index: {}]
  %s4 = inlined_call_operand.hbm [shape: bf16[2,64,32], index: 4, kind: output, shape index: {}]
  %s5 = sld [smem:[#allocation0]]
  $region53: #{patch_conv_forward.1} parent=0
    _
  %s7 = ssub.s32 1, %s5
  %s8 = scalar_select 0, %s7, %s5
  $region1: #{patch_conv_forward.1} parent=0
    #allocation3 [shape = 'u8[32768]{0}', space=vmem, size = 0x8000, scoped, tag = 'output window, operand 0']
    #allocation4 [shape = 's32[2]{0}', space=sflag, size = 0x8, scoped, tag = 'scoped memory for patch_conv_forward.1']
    %9 = vsyncpa [#allocation4], 0
    %s10 = scalar_lea.sflag [#allocation4], 1
    %11 = vsyncpa %s10, 0
    loop: start=0, step=1, limit=4
    $region2: #{patch_conv_forward.1} parent=1 // loop_pre_header
      _
    $region3: #{patch_conv_forward.1} parent=1 // loop_header
      %s13 = sphi 0, %s17
      %p14 = scmp.ge.s32.totalorder %s13, 4
      %s20 = sphi 0, %s32
      %s21 = sphi 0, %s28
      %s22 = sphi 0, %s20
      %s23 = sphi 0, %s21
      %s24 = sphi 0, %s22
      %s25 = sphi 0, %s23
      %s35 = sphi 0, %s37
      %s38 = sphi 0, %s35
      %s39 = sphi 0, %s38
      %s55 = sphi 0, %s39
      %s61 = sphi 0, %s63
      %s64 = sphi 0, %s61
      %s65 = sphi 0, %s64
      %s81 = sphi 0, %s65
      %s87 = sphi 0, %s89
      %s90 = sphi 0, %s87
      %s91 = sphi 0, %s90
      %s107 = sphi 0, %s91
      %s113 = sphi 0, %s115
      %s116 = sphi 0, %s113
      %s117 = sphi 0, %s116
      %s133 = sphi 0, %s117
      %s141 = sphi 0, %s143
      %s144 = sphi 0, %s141
      %s145 = sphi 0, %s144
      %s161 = sphi 0, %s145
    $region4: #{patch_conv_forward.1} parent=1 // loop_header_branch
      %16 = sbr.rel (%p14) target = $region8
    $region5: #{patch_conv_forward.1} parent=1 // loop_body
      %s18 = ssub.s32 %s13, 1
      %s19 = ssub.s32 %s13, 2
      %s26 = sadd.s32 1, %s21
      %p27 = scmp.ge.s32.totalorder %s26, 1
      %s28 = scalar_select %p27, 0, %s26
      %s29 = sadd.s32 1, %s20
      %s30 = scalar_select %p27, %s29, %s20
      %p31 = scmp.ge.s32.totalorder %s30, 2
      %s32 = scalar_select %p31, 0, %s30
      %s33 = ssub.s32 %s20, %s32
      %p34 = scmp.eq.s32.totalorder %s33, 0
      %s36 = sadd.s32 %s35, 1
      %s37 = scalar_select %p34, %s35, %s36
      %p40 = pneg %p34
      %p41 = scmp.eq.s32.totalorder %s13, 1
      %p42 = por %p40, %p41
      %p43 = scmp.ne.s32.totalorder %s35, %s38
      %p44 = scmp.eq.s32.totalorder %s13, 0
      %p45 = por %p43, %p44
      %p46 = scmp.ne.s32.totalorder %s35, %s38
      %p47 = scmp.eq.s32.totalorder %s18, 1
      %p48 = por %p46, %p47
      %p49 = scmp.ne.s32.totalorder %s38, %s39
      %p50 = scmp.eq.s32.totalorder %s18, 0
      %p51 = por %p49, %p50
      %p52 = scmp.ne.s32.totalorder %s38, %s39
      %p53 = scmp.eq.s32.totalorder %s19, 1
      %p54 = por %p52, %p53
      %p56 = scmp.ne.s32.totalorder %s39, %s55
      %p57 = scmp.eq.s32.totalorder %s19, 0
      %p58 = por %p56, %p57
      %s59 = ssub.s32 %s20, %s32
      %p60 = scmp.eq.s32.totalorder %s59, 0
      %s62 = sadd.s32 %s61, 1
      %s63 = scalar_select %p60, %s61, %s62
      %p66 = pneg %p60
      %p67 = scmp.eq.s32.totalorder %s13, 1
      %p68 = por %p66, %p67
      %p69 = scmp.ne.s32.totalorder %s61, %s64
      %p70 = scmp.eq.s32.totalorder %s13, 0
      %p71 = por %p69, %p70
      %p72 = scmp.ne.s32.totalorder %s61, %s64
      %p73 = scmp.eq.s32.totalorder %s18, 1
      %p74 = por %p72, %p73
      %p75 = scmp.ne.s32.totalorder %s64, %s65
      %p76 = scmp.eq.s32.totalorder %s18, 0
      %p77 = por %p75, %p76
      %p78 = scmp.ne.s32.totalorder %s64, %s65
      %p79 = scmp.eq.s32.totalorder %s19, 1
      %p80 = por %p78, %p79
      %p82 = scmp.ne.s32.totalorder %s65, %s81
      %p83 = scmp.eq.s32.totalorder %s19, 0
      %p84 = por %p82, %p83
      %s85 = ssub.s32 %s21, %s28
      %p86 = scmp.eq.s32.totalorder %s85, 0
      %s88 = sadd.s32 %s87, 1
      %s89 = scalar_select %p86, %s87, %s88
      %p92 = pneg %p86
      %p93 = scmp.eq.s32.totalorder %s13, 1
      %p94 = por %p92, %p93
      %p95 = scmp.ne.s32.totalorder %s87, %s90
      %p96 = scmp.eq.s32.totalorder %s13, 0
      %p97 = por %p95, %p96
      %p98 = scmp.ne.s32.totalorder %s87, %s90
      %p99 = scmp.eq.s32.totalorder %s18, 1
      %p100 = por %p98, %p99
      %p101 = scmp.ne.s32.totalorder %s90, %s91
      %p102 = scmp.eq.s32.totalorder %s18, 0
      %p103 = por %p101, %p102
      %p104 = scmp.ne.s32.totalorder %s90, %s91
      %p105 = scmp.eq.s32.totalorder %s19, 1
      %p106 = por %p104, %p105
      %p108 = scmp.ne.s32.totalorder %s91, %s107
      %p109 = scmp.eq.s32.totalorder %s19, 0
      %p110 = por %p108, %p109
      %s111 = ssub.s32 %s21, %s28
      %p112 = scmp.eq.s32.totalorder %s111, 0
      %s114 = sadd.s32 %s113, 1
      %s115 = scalar_select %p112, %s113, %s114
      %p118 = pneg %p112
      %p119 = scmp.eq.s32.totalorder %s13, 1
      %p120 = por %p118, %p119
      %p121 = scmp.ne.s32.totalorder %s113, %s116
      %p122 = scmp.eq.s32.totalorder %s13, 0
      %p123 = por %p121, %p122
      %p124 = scmp.ne.s32.totalorder %s113, %s116
      %p125 = scmp.eq.s32.totalorder %s18, 1
      %p126 = por %p124, %p125
      %p127 = scmp.ne.s32.totalorder %s116, %s117
      %p128 = scmp.eq.s32.totalorder %s18, 0
      %p129 = por %p127, %p128
      %p130 = scmp.ne.s32.totalorder %s116, %s117
      %p131 = scmp.eq.s32.totalorder %s19, 1
      %p132 = por %p130, %p131
      %p134 = scmp.ne.s32.totalorder %s117, %s133
      %p135 = scmp.eq.s32.totalorder %s19, 0
      %p136 = por %p134, %p135
      %s137 = ssub.s32 %s20, %s32
      %s138 = ssub.s32 %s21, %s28
      %s139 = sor.u32 %s137, %s138
      %p140 = scmp.eq.s32.totalorder %s139, 0
      %s142 = sadd.s32 %s141, 1
      %s143 = scalar_select %p140, %s141, %s142
      %p146 = pneg %p140
      %p147 = scmp.eq.s32.totalorder %s13, 1
      %p148 = por %p146, %p147
      %p149 = scmp.ne.s32.totalorder %s141, %s144
      %p150 = scmp.eq.s32.totalorder %s13, 0
      %p151 = por %p149, %p150
      %p152 = scmp.ne.s32.totalorder %s141, %s144
      %p153 = scmp.eq.s32.totalorder %s18, 1
      %p154 = por %p152, %p153
      %p155 = scmp.ne.s32.totalorder %s144, %s145
      %p156 = scmp.eq.s32.totalorder %s18, 0
      %p157 = por %p155, %p156
      %p158 = scmp.ne.s32.totalorder %s144, %s145
      %p159 = scmp.eq.s32.totalorder %s19, 1
      %p160 = por %p158, %p159
      %p162 = scmp.ne.s32.totalorder %s145, %s161
      %p163 = scmp.eq.s32.totalorder %s19, 0
      %p164 = por %p162, %p163
      %p165 = scmp.le.s32.totalorder 1, %s13
      %p166 = scmp.lt.s32.totalorder %s13, 3
      %p167 = pnand %p165, %p166
      %p168 = pneg %p167
      // Predicated region
      $region9: #{patch_conv_forward.1} parent=5 // pred_check
        _
      $region10: #{patch_conv_forward.1} parent=5 // pred_check_branch
        %170 = sbr.rel (%p167) target = $region12
      $region11: #{patch_conv_forward.1} parent=5 // pred_region
        %s171 = ssub.s32 %s13, 1
        // Predicated region
        $region13: #{patch_conv_forward.1} parent=11 // pred_check
          %p172 = pneg %p103
        $region14: #{patch_conv_forward.1} parent=11 // pred_check_branch
          %174 = sbr.rel (%p172) target = $region16
        $region15: #{patch_conv_forward.1} parent=11 // pred_region
          %p175 = scmp.lt.s32.totalorder %s23, 0
          %s176 = scalar_select %p175, %s23, 0
          %s177 = smul.addr %s176, 4
          %s178 = scalar_lea.vmem %s2, %s177
        $region16: #{patch_conv_forward.1} parent=11 // pred_fallthru
          _
        // Predicated region
        $region17: #{patch_conv_forward.1} parent=11 // pred_check
          %p179 = pneg %p129
        $region18: #{patch_conv_forward.1} parent=11 // pred_check_branch
          %181 = sbr.rel (%p179) target = $region20
        $region19: #{patch_conv_forward.1} parent=11 // pred_region
          %p182 = scmp.lt.s32.totalorder %s23, 0
          %s183 = scalar_select %p182, %s23, 0
          %s184 = scalar_lea.vmem %s3, %s183
        $region20: #{patch_conv_forward.1} parent=11 // pred_fallthru
          _
      $region12: #{patch_conv_forward.1} parent=5 // pred_fallthru
        _
      %p185 = scmp.lt.s32.totalorder %s13, 2
      // Predicated region
      $region21: #{patch_conv_forward.1} parent=5 // pred_check
        %p186 = pneg %p185
      $region22: #{patch_conv_forward.1} parent=5 // pred_check_branch
        %188 = sbr.rel (%p186) target = $region24
      $region23: #{patch_conv_forward.1} parent=5 // pred_region
        // Predicated region
        $region25: #{patch_conv_forward.1} parent=23 // pred_check
          %p189 = pneg %p45
        $region26: #{patch_conv_forward.1} parent=23 // pred_check_branch
          %191 = sbr.rel (%p189) target = $region28
        $region27: #{patch_conv_forward.1} parent=23 // pred_region
          %p192 = scmp.lt.s32.totalorder %s20, 1
          %s193 = scalar_select %p192, %s20, 1
          %s194 = smul.addr %s193, 9
          %s195 = smul.addr %s194, 4
          %s196 = scalar_lea.vmem %s0, %s195
        $region28: #{patch_conv_forward.1} parent=23 // pred_fallthru
          _
        // Predicated region
        $region29: #{patch_conv_forward.1} parent=23 // pred_check
          %p197 = pneg %p71
        $region30: #{patch_conv_forward.1} parent=23 // pred_check_branch
          %199 = sbr.rel (%p197) target = $region32
        $region31: #{patch_conv_forward.1} parent=23 // pred_region
          %p200 = scmp.lt.s32.totalorder %s20, 1
          %s201 = scalar_select %p200, %s20, 1
          %s202 = smul.addr %s201, 9
          %s203 = smul.addr %s202, 4
          %s204 = scalar_lea.vmem %s1, %s203
        $region32: #{patch_conv_forward.1} parent=23 // pred_fallthru
          _
      $region24: #{patch_conv_forward.1} parent=5 // pred_fallthru
        _
      %p205 = scmp.le.s32.totalorder 1, %s13
      %p206 = scmp.lt.s32.totalorder %s13, 3
      %p207 = pnand %p205, %p206
      %p208 = pneg %p207
      // Predicated region
      $region33: #{patch_conv_forward.1} parent=5 // pred_check
        _
      $region34: #{patch_conv_forward.1} parent=5 // pred_check_branch
        %210 = sbr.rel (%p207) target = $region36
      $region35: #{patch_conv_forward.1} parent=5 // pred_region
        %s211 = ssub.s32 %s13, 1
        %p212 = scmp.lt.s32.totalorder %s22, 1
        %s213 = scalar_select %p212, %s22, 1
        %s214 = smul.addr %s213, 9
        %s215 = smul.addr %s214, 4
        %s216 = scalar_lea.vmem %s0, %s215
        %p217 = pneg %p51
        %p218 = pneg %p48
        %p219 = scmp.lt.s32.totalorder %s22, 1
        %s220 = scalar_select %p219, %s22, 1
        %s221 = smul.addr %s220, 9
        %s222 = smul.addr %s221, 4
        %s223 = scalar_lea.vmem %s1, %s222
        %p224 = pneg %p77
        %p225 = pneg %p74
        %p226 = scmp.lt.s32.totalorder %s23, 0
        %s227 = scalar_select %p226, %s23, 0
        %s228 = smul.addr %s227, 4
        %s229 = scalar_lea.vmem %s2, %s228
        %p230 = pneg %p103
        %p231 = pneg %p100
        %p232 = scmp.lt.s32.totalorder %s23, 0
        %s233 = scalar_select %p232, %s23, 0
        %s234 = scalar_lea.vmem %s3, %s233
        %p235 = pneg %p129
        %p236 = pneg %p126
        %p237 = pneg %p157
        %p238 = pneg %p154
        %s239 = sand.u32 %s144, 1
        %s240 = scalar_lea.sflag [#allocation4], %s239
        %s241 = sand.u32 %s144, 1
        %s242 = smul.addr %s241, 32
        %s243 = scalar_lea.vmem [#allocation3], %s242
        %p244 = scmp.lt.s32.totalorder %s22, 1
        %s245 = scalar_select %p244, %s22, 1
        %s246 = smul.addr %s245, 9
        %s247 = smul.addr %s246, 4
        %s248 = scalar_lea.vmem %s0, %s247
        %p249 = scmp.lt.s32.totalorder %s22, 1
        %s250 = scalar_select %p249, %s22, 1
        %s251 = smul.addr %s250, 9
        %s252 = smul.addr %s251, 4
        %s253 = scalar_lea.vmem %s1, %s252
        %p254 = scmp.lt.s32.totalorder %s23, 0
        %s255 = scalar_select %p254, %s23, 0
        %s256 = smul.addr %s255, 4
        %s257 = scalar_lea.vmem %s2, %s256
        %p258 = scmp.lt.s32.totalorder %s23, 0
        %s259 = scalar_select %p258, %s23, 0
        %s260 = scalar_lea.vmem %s3, %s259
        %p262 = scmp.eq.s32.totalorder %s23, 0
        // Predicated region
        $region37: #{patch_conv_forward.1} parent=35 // pred_check
          %p263 = pneg %p262
        $region38: #{patch_conv_forward.1} parent=35 // pred_check_branch
          %265 = sbr.rel (%p263) target = $region40
        $region39: #{patch_conv_forward.1} parent=35 // pred_region
          %v266 = vld [vmem:[%s248] sm:$0xf]
          %v267 = vld [vmem:[%s248 + $0x4] sm:$0xf]
          %v268 = vld [vmem:[%s248 + $0x8] sm:$0xf]
          %v269 = vld [vmem:[%s248 + $0xc] sm:$0xf]
          %v270 = vld [vmem:[%s248 + $0x10] sm:$0xf]
          %v271 = vld [vmem:[%s248 + $0x14] sm:$0xf]
          %v272 = vld [vmem:[%s248 + $0x18] sm:$0xf]
          %v273 = vld [vmem:[%s248 + $0x1c] sm:$0xf]
          %v282 = vunpack.c.l.b16 %v266
          %v283 = vunpack.c.l.b16 %v267
          %v284 = vunpack.c.l.b16 %v268
          %v285 = vunpack.c.l.b16 %v269
          %v286 = vunpack.c.l.b16 %v270
          %v287 = vunpack.c.l.b16 %v271
          %v288 = vunpack.c.l.b16 %v272
          %v289 = vunpack.c.l.b16 %v273
          %v290 = vpack.c.b16 %v283, %v282
          %v291 = vpack.c.b16 %v285, %v284
          %v292 = vpack.c.b16 %v287, %v286
          %v293 = vpack.c.b16 %v289, %v288
          %298 = vst [vmem:[#allocation2] sm:$0xff] %v290
          %299 = vst [vmem:[#allocation2 + $0x20] sm:$0xff] %v291
          %300 = vst [vmem:[#allocation2 + $0x40] sm:$0xff] %v292
          %301 = vst [vmem:[#allocation2 + $0x60] sm:$0xff] %v293
          %v302 = vld [vmem:[%s253] sm:$0xf]
          %v303 = vld [vmem:[%s253 + $0x4] sm:$0xf]
          %v304 = vld [vmem:[%s253 + $0x8] sm:$0xf]
          %v305 = vld [vmem:[%s253 + $0xc] sm:$0xf]
          %v306 = vld [vmem:[%s253 + $0x10] sm:$0xf]
          %v307 = vld [vmem:[%s253 + $0x14] sm:$0xf]
          %v308 = vld [vmem:[%s253 + $0x18] sm:$0xf]
          %v309 = vld [vmem:[%s253 + $0x1c] sm:$0xf]
          %v318 = vunpack.c.l.b16 %v302
          %v319 = vunpack.c.l.b16 %v303
          %v320 = vunpack.c.l.b16 %v304
          %v321 = vunpack.c.l.b16 %v305
          %v322 = vunpack.c.l.b16 %v306
          %v323 = vunpack.c.l.b16 %v307
          %v324 = vunpack.c.l.b16 %v308
          %v325 = vunpack.c.l.b16 %v309
          %v326 = vpack.c.b16 %v319, %v318
          %v327 = vpack.c.b16 %v321, %v320
          %v328 = vpack.c.b16 %v323, %v322
          %v329 = vpack.c.b16 %v325, %v324
          %334 = vst [vmem:[#allocation2 + $0x8] sm:$0xff] %v326
          %335 = vst [vmem:[#allocation2 + $0x28] sm:$0xff] %v327
          %336 = vst [vmem:[#allocation2 + $0x48] sm:$0xff] %v328
          %337 = vst [vmem:[#allocation2 + $0x68] sm:$0xff] %v329
          %v338 = vld [vmem:[%s248 + $0x4] sm:$0xf]
          %v339 = vld [vmem:[%s248 + $0x8] sm:$0xf]
          %v340 = vld [vmem:[%s248 + $0xc] sm:$0xf]
          %v341 = vld [vmem:[%s248 + $0x10] sm:$0xf]
          %v342 = vld [vmem:[%s248 + $0x14] sm:$0xf]
          %v343 = vld [vmem:[%s248 + $0x18] sm:$0xf]
          %v344 = vld [vmem:[%s248 + $0x1c] sm:$0xf]
          %v345 = vld [vmem:[%s248 + $0x20] sm:$0xf]
          %v354 = vunpack.c.l.b16 %v338
          %v355 = vunpack.c.l.b16 %v339
          %v356 = vunpack.c.l.b16 %v340
          %v357 = vunpack.c.l.b16 %v341
          %v358 = vunpack.c.l.b16 %v342
          %v359 = vunpack.c.l.b16 %v343
          %v360 = vunpack.c.l.b16 %v344
          %v361 = vunpack.c.l.b16 %v345
          %v362 = vpack.c.b16 %v355, %v354
          %v363 = vpack.c.b16 %v357, %v356
          %v364 = vpack.c.b16 %v359, %v358
          %v365 = vpack.c.b16 %v361, %v360
          %370 = vst [vmem:[#allocation2 + $0x10] sm:$0xff] %v362
          %371 = vst [vmem:[#allocation2 + $0x30] sm:$0xff] %v363
          %372 = vst [vmem:[#allocation2 + $0x50] sm:$0xff] %v364
          %373 = vst [vmem:[#allocation2 + $0x70] sm:$0xff] %v365
          %v374 = vld [vmem:[%s253 + $0x4] sm:$0xf]
          %v375 = vld [vmem:[%s253 + $0x8] sm:$0xf]
          %v376 = vld [vmem:[%s253 + $0xc] sm:$0xf]
          %v377 = vld [vmem:[%s253 + $0x10] sm:$0xf]
          %v378 = vld [vmem:[%s253 + $0x14] sm:$0xf]
          %v379 = vld [vmem:[%s253 + $0x18] sm:$0xf]
          %v380 = vld [vmem:[%s253 + $0x1c] sm:$0xf]
          %v381 = vld [vmem:[%s253 + $0x20] sm:$0xf]
          %v390 = vunpack.c.l.b16 %v374
          %v391 = vunpack.c.l.b16 %v375
          %v392 = vunpack.c.l.b16 %v376
          %v393 = vunpack.c.l.b16 %v377
          %v394 = vunpack.c.l.b16 %v378
          %v395 = vunpack.c.l.b16 %v379
          %v396 = vunpack.c.l.b16 %v380
          %v397 = vunpack.c.l.b16 %v381
          %v398 = vpack.c.b16 %v391, %v390
          %v399 = vpack.c.b16 %v393, %v392
          %v400 = vpack.c.b16 %v395, %v394
          %v401 = vpack.c.b16 %v397, %v396
          %406 = vst [vmem:[#allocation2 + $0x18] sm:$0xff] %v398
          %407 = vst [vmem:[#allocation2 + $0x38] sm:$0xff] %v399
          %408 = vst [vmem:[#allocation2 + $0x58] sm:$0xff] %v400
          %409 = vst [vmem:[#allocation2 + $0x78] sm:$0xff] %v401
        $region40: #{patch_conv_forward.1} parent=35 // pred_fallthru
          _
        %v410 = vld [vmem:[#allocation2] sm:$0xff]
        %v411 = vld [vmem:[#allocation2 + $0x8] sm:$0xff]
        %v412 = vld [vmem:[#allocation2 + $0x10] sm:$0xff]
        %v413 = vld [vmem:[#allocation2 + $0x18] sm:$0xff]
        %v414 = vld [vmem:[#allocation2 + $0x20] sm:$0xff]
        %v415 = vld [vmem:[#allocation2 + $0x28] sm:$0xff]
        %v416 = vld [vmem:[#allocation2 + $0x30] sm:$0xff]
        %v417 = vld [vmem:[#allocation2 + $0x38] sm:$0xff]
        %v418 = vld [vmem:[#allocation2 + $0x40] sm:$0xff]
        %v419 = vld [vmem:[#allocation2 + $0x48] sm:$0xff]
        %v420 = vld [vmem:[#allocation2 + $0x50] sm:$0xff]
        %v421 = vld [vmem:[#allocation2 + $0x58] sm:$0xff]
        %v422 = vld [vmem:[#allocation2 + $0x60] sm:$0xff]
        %v423 = vld [vmem:[#allocation2 + $0x68] sm:$0xff]
        %v424 = vld [vmem:[#allocation2 + $0x70] sm:$0xff]
        %v425 = vld [vmem:[#allocation2 + $0x78] sm:$0xff]
        %v426 = vld [vmem:[%s257] sm:$0xf]
        %v427 = vld [vmem:[%s257 + $0x4] sm:$0xf]
        %v428 = vld [vmem:[%s257 + $0x8] sm:$0xf]
        %v429 = vld [vmem:[%s257 + $0xc] sm:$0xf]
        %v430 = vld [vmem:[%s257 + $0x10] sm:$0xf]
        %v431 = vld [vmem:[%s257 + $0x14] sm:$0xf]
        %v432 = vld [vmem:[%s257 + $0x18] sm:$0xf]
        %v433 = vld [vmem:[%s257 + $0x1c] sm:$0xf]
        %v434 = vld [vmem:[%s257 + $0x20] sm:$0xf]
        %v435 = vld [vmem:[%s257 + $0x24] sm:$0xf]
        %v436 = vld [vmem:[%s257 + $0x28] sm:$0xf]
        %v437 = vld [vmem:[%s257 + $0x2c] sm:$0xf]
        %v438 = vld [vmem:[%s257 + $0x30] sm:$0xf]
        %v439 = vld [vmem:[%s257 + $0x34] sm:$0xf]
        %v440 = vld [vmem:[%s257 + $0x38] sm:$0xf]
        %v441 = vld [vmem:[%s257 + $0x3c] sm:$0xf]
        %v442 = vld [vmem:[%s257 + $0x40] sm:$0xf]
        %v443 = vld [vmem:[%s257 + $0x44] sm:$0xf]
        %v444 = vld [vmem:[%s257 + $0x48] sm:$0xf]
        %v445 = vld [vmem:[%s257 + $0x4c] sm:$0xf]
        %v446 = vld [vmem:[%s257 + $0x50] sm:$0xf]
        %v447 = vld [vmem:[%s257 + $0x54] sm:$0xf]
        %v448 = vld [vmem:[%s257 + $0x58] sm:$0xf]
        %v449 = vld [vmem:[%s257 + $0x5c] sm:$0xf]
        %v450 = vld [vmem:[%s257 + $0x60] sm:$0xf]
        %v451 = vld [vmem:[%s257 + $0x64] sm:$0xf]
        %v452 = vld [vmem:[%s257 + $0x68] sm:$0xf]
        %v453 = vld [vmem:[%s257 + $0x6c] sm:$0xf]
        %v454 = vld [vmem:[%s257 + $0x70] sm:$0xf]
        %v455 = vld [vmem:[%s257 + $0x74] sm:$0xf]
        %v456 = vld [vmem:[%s257 + $0x78] sm:$0xf]
        %v457 = vld [vmem:[%s257 + $0x7c] sm:$0xf]
        %v458 = vld [vmem:[%s257 + $0x80] sm:$0xf]
        %v459 = vld [vmem:[%s257 + $0x84] sm:$0xf]
        %v460 = vld [vmem:[%s257 + $0x88] sm:$0xf]
        %v461 = vld [vmem:[%s257 + $0x8c] sm:$0xf]
        %v462 = vld [vmem:[%s257 + $0x90] sm:$0xf]
        %v463 = vld [vmem:[%s257 + $0x94] sm:$0xf]
        %v464 = vld [vmem:[%s257 + $0x98] sm:$0xf]
        %v465 = vld [vmem:[%s257 + $0x9c] sm:$0xf]
        %v466 = vld [vmem:[%s257 + $0xa0] sm:$0xf]
        %v467 = vld [vmem:[%s257 + $0xa4] sm:$0xf]
        %v468 = vld [vmem:[%s257 + $0xa8] sm:$0xf]
        %v469 = vld [vmem:[%s257 + $0xac] sm:$0xf]
        %v470 = vld [vmem:[%s257 + $0xb0] sm:$0xf]
        %v471 = vld [vmem:[%s257 + $0xb4] sm:$0xf]
        %v472 = vld [vmem:[%s257 + $0xb8] sm:$0xf]
        %v473 = vld [vmem:[%s257 + $0xbc] sm:$0xf]
        %v474 = vld [vmem:[%s257 + $0xc0] sm:$0xf]
        %v475 = vld [vmem:[%s257 + $0xc4] sm:$0xf]
        %v476 = vld [vmem:[%s257 + $0xc8] sm:$0xf]
        %v477 = vld [vmem:[%s257 + $0xcc] sm:$0xf]
        %v478 = vld [vmem:[%s257 + $0xd0] sm:$0xf]
        %v479 = vld [vmem:[%s257 + $0xd4] sm:$0xf]
        %v480 = vld [vmem:[%s257 + $0xd8] sm:$0xf]
        %v481 = vld [vmem:[%s257 + $0xdc] sm:$0xf]
        %v482 = vld [vmem:[%s257 + $0xe0] sm:$0xf]
        %v483 = vld [vmem:[%s257 + $0xe4] sm:$0xf]
        %v484 = vld [vmem:[%s257 + $0xe8] sm:$0xf]
        %v485 = vld [vmem:[%s257 + $0xec] sm:$0xf]
        %v486 = vld [vmem:[%s257 + $0xf0] sm:$0xf]
        %v487 = vld [vmem:[%s257 + $0xf4] sm:$0xf]
        %v488 = vld [vmem:[%s257 + $0xf8] sm:$0xf]
        %v489 = vld [vmem:[%s257 + $0xfc] sm:$0xf]
        %v490 = vld [vmem:[%s260] sm:$0x1]
        %v492 = vlaneseq
        %v493 = vshrl.u32 %v492, 7
        %v494 = vsub.s32 0, %v493
        %v495 = vrot.slane %v490, %v494
        %v561 = vunpack.c.l.b16 %v426
        %v562 = vunpack.c.l.b16 %v427
        %v563 = vunpack.c.l.b16 %v428
        %v564 = vunpack.c.l.b16 %v429
        %v565 = vunpack.c.l.b16 %v430
        %v566 = vunpack.c.l.b16 %v431
        %v567 = vunpack.c.l.b16 %v432
        %v568 = vunpack.c.l.b16 %v433
        %v569 = vunpack.c.l.b16 %v434
        %v570 = vunpack.c.l.b16 %v435
        %v571 = vunpack.c.l.b16 %v436
        %v572 = vunpack.c.l.b16 %v437
        %v573 = vunpack.c.l.b16 %v438
        %v574 = vunpack.c.l.b16 %v439
        %v575 = vunpack.c.l.b16 %v440
        %v576 = vunpack.c.l.b16 %v441
        %v577 = vunpack.c.l.b16 %v442
        %v578 = vunpack.c.l.b16 %v443
        %v579 = vunpack.c.l.b16 %v444
        %v580 = vunpack.c.l.b16 %v445
        %v581 = vunpack.c.l.b16 %v446
        %v582 = vunpack.c.l.b16 %v447
        %v583 = vunpack.c.l.b16 %v448
        %v584 = vunpack.c.l.b16 %v449
        %v585 = vunpack.c.l.b16 %v450
        %v586 = vunpack.c.l.b16 %v451
        %v587 = vunpack.c.l.b16 %v452
        %v588 = vunpack.c.l.b16 %v453
        %v589 = vunpack.c.l.b16 %v454
        %v590 = vunpack.c.l.b16 %v455
        %v591 = vunpack.c.l.b16 %v456
        %v592 = vunpack.c.l.b16 %v457
        %v593 = vunpack.c.l.b16 %v458
        %v594 = vunpack.c.l.b16 %v459
        %v595 = vunpack.c.l.b16 %v460
        %v596 = vunpack.c.l.b16 %v461
        %v597 = vunpack.c.l.b16 %v462
        %v598 = vunpack.c.l.b16 %v463
        %v599 = vunpack.c.l.b16 %v464
        %v600 = vunpack.c.l.b16 %v465
        %v601 = vunpack.c.l.b16 %v466
        %v602 = vunpack.c.l.b16 %v467
        %v603 = vunpack.c.l.b16 %v468
        %v604 = vunpack.c.l.b16 %v469
        %v605 = vunpack.c.l.b16 %v470
        %v606 = vunpack.c.l.b16 %v471
        %v607 = vunpack.c.l.b16 %v472
        %v608 = vunpack.c.l.b16 %v473
        %v609 = vunpack.c.l.b16 %v474
        %v610 = vunpack.c.l.b16 %v475
        %v611 = vunpack.c.l.b16 %v476
        %v612 = vunpack.c.l.b16 %v477
        %v613 = vunpack.c.l.b16 %v478
        %v614 = vunpack.c.l.b16 %v479
        %v615 = vunpack.c.l.b16 %v480
        %v616 = vunpack.c.l.b16 %v481
        %v617 = vunpack.c.l.b16 %v482
        %v618 = vunpack.c.l.b16 %v483
        %v619 = vunpack.c.l.b16 %v484
        %v620 = vunpack.c.l.b16 %v485
        %v621 = vunpack.c.l.b16 %v486
        %v622 = vunpack.c.l.b16 %v487
        %v623 = vunpack.c.l.b16 %v488
        %v624 = vunpack.c.l.b16 %v489
        %v625 = vpack.c.b16 %v562, %v561
        %v626 = vpack.c.b16 %v564, %v563
        %v627 = vpack.c.b16 %v566, %v565
        %v628 = vpack.c.b16 %v568, %v567
        %v629 = vpack.c.b16 %v570, %v569
        %v630 = vpack.c.b16 %v572, %v571
        %v631 = vpack.c.b16 %v574, %v573
        %v632 = vpack.c.b16 %v576, %v575
        %v633 = vpack.c.b16 %v578, %v577
        %v634 = vpack.c.b16 %v580, %v579
        %v635 = vpack.c.b16 %v582, %v581
        %v636 = vpack.c.b16 %v584, %v583
        %v637 = vpack.c.b16 %v586, %v585
        %v638 = vpack.c.b16 %v588, %v587
        %v639 = vpack.c.b16 %v590, %v589
        %v640 = vpack.c.b16 %v592, %v591
        %v641 = vpack.c.b16 %v594, %v593
        %v642 = vpack.c.b16 %v596, %v595
        %v643 = vpack.c.b16 %v598, %v597
        %v644 = vpack.c.b16 %v600, %v599
        %v645 = vpack.c.b16 %v602, %v601
        %v646 = vpack.c.b16 %v604, %v603
        %v647 = vpack.c.b16 %v606, %v605
        %v648 = vpack.c.b16 %v608, %v607
        %v649 = vpack.c.b16 %v610, %v609
        %v650 = vpack.c.b16 %v612, %v611
        %v651 = vpack.c.b16 %v614, %v613
        %v652 = vpack.c.b16 %v616, %v615
        %v653 = vpack.c.b16 %v618, %v617
        %v654 = vpack.c.b16 %v620, %v619
        %v655 = vpack.c.b16 %v622, %v621
        %v656 = vpack.c.b16 %v624, %v623
        %689 = vmatprep.subr.bf16.mxu0 0
        %690 = vmatpush1.bf16.msra.mxu0 %v625
        %691 = vmatprep.subr.bf16.mxu0 0
        %692 = vmatpush1.bf16.msra.mxu0 %v626
        %693 = vmatprep.subr.bf16.mxu0 0
        %694 = vmatpush1.bf16.msra.mxu0 %v627
        %695 = vmatprep.subr.bf16.mxu0 0
        %696 = vmatpush1.bf16.msra.mxu0 %v628
        %697 = vmatprep.subr.bf16.mxu0 0
        %698 = vmatpush1.bf16.msra.mxu0 %v629
        %699 = vmatprep.subr.bf16.mxu0 0
        %700 = vmatpush1.bf16.msra.mxu0 %v630
        %701 = vmatprep.subr.bf16.mxu0 0
        %702 = vmatpush1.bf16.msra.mxu0 %v631
        %703 = vmatprep.subr.bf16.mxu0 0
        %704 = vmatpush1.bf16.msra.mxu0 %v632
        %705 = vmatprep.subr.bf16.mxu0 0
        %706 = vmatpush1.bf16.msra.mxu0 %v633
        %707 = vmatprep.subr.bf16.mxu0 0
        %708 = vmatpush1.bf16.msra.mxu0 %v634
        %709 = vmatprep.subr.bf16.mxu0 0
        %710 = vmatpush1.bf16.msra.mxu0 %v635
        %711 = vmatprep.subr.bf16.mxu0 0
        %712 = vmatpush1.bf16.msra.mxu0 %v636
        %713 = vmatprep.subr.bf16.mxu0 0
        %714 = vmatpush1.bf16.msra.mxu0 %v637
        %715 = vmatprep.subr.bf16.mxu0 0
        %716 = vmatpush1.bf16.msra.mxu0 %v638
        %717 = vmatprep.subr.bf16.mxu0 0
        %718 = vmatpush1.bf16.msra.mxu0 %v639
        %719 = vmatprep.subr.bf16.mxu0 0
        %720 = vmatpush1.bf16.msra.mxu0 %v640
        %721 = vmatprep.mubr.bf16.mxu0 %v411
        %722 = vmatmul.mubr.bf16.gmra.mrb[0].mxu0 %v410
        %v723 = vpop.f32.mrb[0].mxu0
        %v724 = vadd.f32 %v495, %v723
        %v725 = vpop.f32.mrb[0].mxu0
        %v726 = vpop.f32.mrb[0].mxu0
        %v727 = vadd.f32 %v495, %v726
        %v728 = vpop.f32.mrb[0].mxu0
        %729 = vmatprep.mubr.bf16.mxu0 %v415
        %730 = vmatmul.mubr.bf16.gmra.mrb[0].mxu0 %v414
        %v731 = vpop.f32.mrb[0].mxu0
        %v732 = vadd.f32 %v495, %v731
        %v733 = vpop.f32.mrb[0].mxu0
        %v734 = vpop.f32.mrb[0].mxu0
        %v735 = vadd.f32 %v495, %v734
        %v736 = vpop.f32.mrb[0].mxu0
        %737 = vmatprep.mubr.bf16.mxu0 %v419
        %738 = vmatmul.mubr.bf16.gmra.mrb[0].mxu0 %v418
        %v739 = vpop.f32.mrb[0].mxu0
        %v740 = vadd.f32 %v495, %v739
        %v741 = vpop.f32.mrb[0].mxu0
        %v742 = vpop.f32.mrb[0].mxu0
        %v743 = vadd.f32 %v495, %v742
        %v744 = vpop.f32.mrb[0].mxu0
        %745 = vmatprep.mubr.bf16.mxu0 %v423
        %746 = vmatmul.mubr.bf16.gmra.mrb[0].mxu0 %v422
        %v747 = vpop.f32.mrb[0].mxu0
        %v748 = vadd.f32 %v495, %v747
        %v749 = vpop.f32.mrb[0].mxu0
        %v750 = vpop.f32.mrb[0].mxu0
        %v751 = vadd.f32 %v495, %v750
        %v752 = vpop.f32.mrb[0].mxu0
        %753 = vdwg.mxu0
        %754 = vmatprep.subr.bf16.mxu0 0
        %755 = vmatpush1.bf16.msra.mxu0 %v641
        %756 = vmatprep.subr.bf16.mxu0 0
        %757 = vmatpush1.bf16.msra.mxu0 %v642
        %758 = vmatprep.subr.bf16.mxu0 0
        %759 = vmatpush1.bf16.msra.mxu0 %v643
        %760 = vmatprep.subr.bf16.mxu0 0
        %761 = vmatpush1.bf16.msra.mxu0 %v644
        %762 = vmatprep.subr.bf16.mxu0 0
        %763 = vmatpush1.bf16.msra.mxu0 %v645
        %764 = vmatprep.subr.bf16.mxu0 0
        %765 = vmatpush1.bf16.msra.mxu0 %v646
        %766 = vmatprep.subr.bf16.mxu0 0
        %767 = vmatpush1.bf16.msra.mxu0 %v647
        %768 = vmatprep.subr.bf16.mxu0 0
        %769 = vmatpush1.bf16.msra.mxu0 %v648
        %770 = vmatprep.subr.bf16.mxu0 0
        %771 = vmatpush1.bf16.msra.mxu0 %v649
        %772 = vmatprep.subr.bf16.mxu0 0
        %773 = vmatpush1.bf16.msra.mxu0 %v650
        %774 = vmatprep.subr.bf16.mxu0 0
        %775 = vmatpush1.bf16.msra.mxu0 %v651
        %776 = vmatprep.subr.bf16.mxu0 0
        %777 = vmatpush1.bf16.msra.mxu0 %v652
        %778 = vmatprep.subr.bf16.mxu0 0
        %779 = vmatpush1.bf16.msra.mxu0 %v653
        %780 = vmatprep.subr.bf16.mxu0 0
        %781 = vmatpush1.bf16.msra.mxu0 %v654
        %782 = vmatprep.subr.bf16.mxu0 0
        %783 = vmatpush1.bf16.msra.mxu0 %v655
        %784 = vmatprep.subr.bf16.mxu0 0
        %785 = vmatpush1.bf16.msra.mxu0 %v656
        %786 = vmatprep.mubr.bf16.mxu0 %v413
        %787 = vmatmul.mubr.bf16.gmra.mrb[0].mxu0 %v412
        %v788 = vpop.f32.mrb[0].mxu0
        %v789 = vadd.f32 %v724, %v788
        %v790 = vpop.f32.mrb[0].mxu0
        %v791 = vpop.f32.mrb[0].mxu0
        %v792 = vadd.f32 %v727, %v791
        %v793 = vpop.f32.mrb[0].mxu0
        %794 = vmatprep.mubr.bf16.mxu0 %v417
        %795 = vmatmul.mubr.bf16.gmra.mrb[0].mxu0 %v416
        %v796 = vpop.f32.mrb[0].mxu0
        %v797 = vadd.f32 %v732, %v796
        %v798 = vpop.f32.mrb[0].mxu0
        %v799 = vpop.f32.mrb[0].mxu0
        %v800 = vadd.f32 %v735, %v799
        %v801 = vpop.f32.mrb[0].mxu0
        %802 = vmatprep.mubr.bf16.mxu0 %v421
        %803 = vmatmul.mubr.bf16.gmra.mrb[0].mxu0 %v420
        %v804 = vpop.f32.mrb[0].mxu0
        %v805 = vadd.f32 %v740, %v804
        %v806 = vpop.f32.mrb[0].mxu0
        %v807 = vpop.f32.mrb[0].mxu0
        %v808 = vadd.f32 %v743, %v807
        %v809 = vpop.f32.mrb[0].mxu0
        %810 = vmatprep.mubr.bf16.mxu0 %v425
        %811 = vmatmul.mubr.bf16.gmra.mrb[0].mxu0 %v424
        %v812 = vpop.f32.mrb[0].mxu0
        %v813 = vadd.f32 %v748, %v812
        %v814 = vpop.f32.mrb[0].mxu0
        %v815 = vpop.f32.mrb[0].mxu0
        %v816 = vadd.f32 %v751, %v815
        %v817 = vpop.f32.mrb[0].mxu0
        %818 = vdwg.mxu0
        %v819 = vmul.f32 %v789, 0.2
        %v820 = vmul.f32 %v792, 0.2
        %v821 = vmul.f32 %v797, 0.2
        %v822 = vmul.f32 %v800, 0.2
        %v823 = vmul.f32 %v805, 0.2
        %v824 = vmul.f32 %v808, 0.2
        %v825 = vmul.f32 %v813, 0.2
        %v826 = vmul.f32 %v816, 0.2
        %v827 = vmax.f32 %v789, %v819
        %v828 = vmax.f32 %v792, %v820
        %v829 = vmax.f32 %v797, %v821
        %v830 = vmax.f32 %v800, %v822
        %v831 = vmax.f32 %v805, %v823
        %v832 = vmax.f32 %v808, %v824
        %v833 = vmax.f32 %v813, %v825
        %v834 = vmax.f32 %v816, %v826
        %v835 = vpack.c.bf16 %v828, %v827
        %v836 = vpack.c.bf16 %v830, %v829
        %v837 = vpack.c.bf16 %v832, %v831
        %v838 = vpack.c.bf16 %v834, %v833
        %v843 = vunpack.c.l.b16 %v835
        %v844 = vunpack.c.h.b16 %v835
        %v845 = vunpack.c.l.b16 %v836
        %v846 = vunpack.c.h.b16 %v836
        %v847 = vunpack.c.l.b16 %v837
        %v848 = vunpack.c.h.b16 %v837
        %v849 = vunpack.c.l.b16 %v838
        %v850 = vunpack.c.h.b16 %v838
        %v851 = vpack.c.b16 %v843, %v843
        %v852 = vpack.c.b16 %v844, %v844
        %v853 = vpack.c.b16 %v845, %v845
        %v854 = vpack.c.b16 %v846, %v846
        %v855 = vpack.c.b16 %v847, %v847
        %v856 = vpack.c.b16 %v848, %v848
        %v857 = vpack.c.b16 %v849, %v849
        %v858 = vpack.c.b16 %v850, %v850
        %vm867 = vcmask 257024
        %868 = vst.msk [vmem:[%s243] sm:$0xf] %vm867, %v851
        %869 = vst.msk [vmem:[%s243 + $0x4] sm:$0xf] %vm867, %v852
        %870 = vst.msk [vmem:[%s243 + $0x8] sm:$0xf] %vm867, %v853
        %871 = vst.msk [vmem:[%s243 + $0xc] sm:$0xf] %vm867, %v854
        %872 = vst.msk [vmem:[%s243 + $0x10] sm:$0xf] %vm867, %v855
        %873 = vst.msk [vmem:[%s243 + $0x14] sm:$0xf] %vm867, %v856
        %874 = vst.msk [vmem:[%s243 + $0x18] sm:$0xf] %vm867, %v857
        %875 = vst.msk [vmem:[%s243 + $0x1c] sm:$0xf] %vm867, %v858
        %s876 = sand.u32 %s144, 1
        %s877 = scalar_lea.sflag [#allocation4], %s876
        %s878 = sand.u32 %s144, 1
        %s879 = smul.addr %s878, 32
        %s880 = scalar_lea.vmem [#allocation3], %s879
        // Predicated region
        $region41: #{patch_conv_forward.1} parent=35 // pred_check
          %p881 = pneg %p154
        $region42: #{patch_conv_forward.1} parent=35 // pred_check_branch
          %883 = sbr.rel (%p881) target = $region44
        $region43: #{patch_conv_forward.1} parent=35 // pred_region
          %s885 = ssub.s32 512, 512
          %886 = vsyncadd %s877, %s885
          %s887 = smul.addr %s22, 8
          %s888 = sadd.s32 %s23, %s887
          %s889 = smul.addr %s888, 64
          %s890 = scalar_lea.hbm %s4, %s889
          %s891 = sshll.u32 %s880, 4
          %s892 = int_to_ptr.vmem [resolvable:$true] %s891
          %897 = dma.vmem_to_hbm [thread:$0]  %s892, 512, %s890, %s877, 64, 64, 4
        $region44: #{patch_conv_forward.1} parent=35 // pred_fallthru
          _
      $region36: #{patch_conv_forward.1} parent=5 // pred_fallthru
        _
      %p898 = scmp.le.s32.totalorder 2, %s13
      // Predicated region
      $region45: #{patch_conv_forward.1} parent=5 // pred_check
        %p899 = pneg %p898
      $region46: #{patch_conv_forward.1} parent=5 // pred_check_branch
        %901 = sbr.rel (%p899) target = $region48
      $region47: #{patch_conv_forward.1} parent=5 // pred_region
        %s902 = ssub.s32 %s13, 2
        // Predicated region
        $region49: #{patch_conv_forward.1} parent=47 // pred_check
          %p903 = pneg %p160
        $region50: #{patch_conv_forward.1} parent=47 // pred_check_branch
          %905 = sbr.rel (%p903) target = $region52
        $region51: #{patch_conv_forward.1} parent=47 // pred_region
          %s906 = sand.u32 %s145, 1
          %s907 = scalar_lea.sflag [#allocation4], %s906
          %s908 = sand.u32 %s145, 1
          %s909 = smul.addr %s908, 32
          %s910 = scalar_lea.vmem [#allocation3], %s909
          %911 = dma.done %s907, 512
        $region52: #{patch_conv_forward.1} parent=47 // pred_fallthru
          _
      $region48: #{patch_conv_forward.1} parent=5 // pred_fallthru
        _
    $region6: #{patch_conv_forward.1} parent=1 // loop_footer
      %s17 = sadd.s32 1, %s13
    $region7: #{patch_conv_forward.1} parent=1 // loop_footer_branch
      %12 = sbr.rel target = $region3
    $region8: #{patch_conv_forward.1} parent=1 // loop_exit
      _
    %912 = vsyncpa [#allocation4], 1
    %s913 = scalar_lea.sflag [#allocation4], 1
    %914 = vsyncpa %s913, 1

</llo_original>
